<compile_context>
chip_gen: v7x
topology: tpu7x:2x2x1
jax: 0.10.0
libtpu: 0.0.40
codegen_flags: <defaults>
</compile_context>

<pallas_src>
import functools

import jax
import jax.numpy as jnp
from jax.experimental import pallas as pl
from jax.experimental.pallas import tpu as pltpu

_LANE = 128     # vreg lane width (last dim)
_SUBLANE = 8    # vreg sublane count (second-to-last dim)


def _round_up(v, m):
    return (v + m - 1) // m * m


def _fused_gcn_kernel(*refs, n_layers):
    """refs = (adj, x, w0, b0, w1, b1, ..., out). All 2-D VMEM tiles."""
    adj_ref = refs[0]
    x_ref = refs[1]
    o_ref = refs[2 + 2 * n_layers]

    adj = adj_ref[...]          # [Np, Np]
    h = x_ref[...]              # [Np, F0p]
    for i in range(n_layers):
        w = refs[2 + 2 * i][...]      # [F_in_p, F_out_p]
        b = refs[3 + 2 * i][...]      # [1, F_out_p] -> broadcasts over nodes
        if w.shape[1] <= h.shape[1]:
            # (x @ W) first: N*F_in*F_out + N^2*F_out flops, smaller intermediate.
            hw = jnp.dot(h, w, preferred_element_type=jnp.float32)
            h = jnp.dot(adj, hw, preferred_element_type=jnp.float32)
        else:
            # (adj @ x) first when the layer expands features.
            ah = jnp.dot(adj, h, preferred_element_type=jnp.float32)
            h = jnp.dot(ah, w, preferred_element_type=jnp.float32)
        h = h + b
        if i < n_layers - 1:
            h = jnp.maximum(h, 0.0)   # np.clip(x, 0, None)
    o_ref[...] = h.astype(o_ref.dtype)


def gcn_inference_batched(x, adj, weights):
    """Fused multi-layer GCN over a batch of graphs.

    x:   [B, N, F_in]   node features per graph
    adj: [B, N, N]      adjacency per graph
    weights: list of (W_i [F_in_i, F_out_i], b_i [F_out_i]) shared across graphs
    returns [B, N, F_out_last]
    """
    B, N, F_in = x.shape
    assert adj.shape == (B, N, N)
    n_layers = len(weights)
    f_dims = [F_in] + [w.shape[1] for (w, _) in weights]

    # Pad node axis to a sublane multiple and feature dims to lane multiples so
    # every matmul operand / store is dense (zero padding keeps the math exact).
    n_p = max(_round_up(N, _SUBLANE), _SUBLANE)
    f_pad = [max(_round_up(f, _LANE), _LANE) for f in f_dims]

    x_p = jnp.zeros((B, n_p, f_pad[0]), jnp.float32).at[:, :N, :F_in].set(
        x.astype(jnp.float32))
    adj_p = jnp.zeros((B, n_p, n_p), jnp.float32).at[:, :N, :N].set(
        adj.astype(jnp.float32))

    in_specs = [
        pl.BlockSpec((pl.Squeezed(), n_p, n_p), lambda b: (b, 0, 0)),       # adj
        pl.BlockSpec((pl.Squeezed(), n_p, f_pad[0]), lambda b: (b, 0, 0)),  # x
    ]
    padded_wb = []
    for i, (w, bvec) in enumerate(weights):
        fi, fo = f_dims[i], f_dims[i + 1]
        fip, fop = f_pad[i], f_pad[i + 1]
        w_p = jnp.zeros((fip, fop), jnp.float32).at[:fi, :fo].set(
            w.astype(jnp.float32))
        b_p = jnp.zeros((1, fop), jnp.float32).at[:, :fo].set(
            bvec.reshape(1, fo).astype(jnp.float32))
        padded_wb += [w_p, b_p]
        # Constant index_map -> weights/bias stay resident in VMEM across the grid.
        in_specs += [
            pl.BlockSpec((fip, fop), lambda b: (0, 0)),
            pl.BlockSpec((1, fop), lambda b: (0, 0)),
        ]

    out_spec = pl.BlockSpec((pl.Squeezed(), n_p, f_pad[-1]), lambda b: (b, 0, 0))

    kernel = functools.partial(_fused_gcn_kernel, n_layers=n_layers)
    out_p = pl.pallas_call(
        kernel,
        out_shape=jax.ShapeDtypeStruct((B, n_p, f_pad[-1]), jnp.float32),
        grid=(B,),
        in_specs=in_specs,
        out_specs=out_spec,
        compiler_params=pltpu.CompilerParams(
            dimension_semantics=("parallel",),   # shard graphs across TCs (v7x)
        ),
    )(adj_p, x_p, *padded_wb)

    return out_p[:, :N, :f_dims[-1]]


def gcn_inference(x, adj, weights):
    """Mirrors GCNInference.forward for a single graph (x [N,F], adj [N,N])."""
    return gcn_inference_batched(x[None], adj[None], weights)[0]


def _reference_single(x, adj, weights):
    n_layers = len(weights)
    for i, (w, b) in enumerate(weights):
        x = adj @ x @ w + b
        if i < n_layers - 1:
            x = jnp.clip(x, 0, None)
    return x


if __name__ == "__main__":
    key = jax.random.PRNGKey(0)
    k_x, k_adj, k_w0, k_b0, k_w1, k_b1, k_xb, k_adjb = jax.random.split(key, 8)

    # Small shapes consistent with the module: N nodes, feature dims 32 -> 32 -> 16.
    N, F_IN, F_HID, F_OUT = 8, 32, 32, 16
    B = 4  # small batch of graphs for the batched path

    x = jax.random.normal(k_x, (N, F_IN), dtype=jnp.float32)
    adj = jax.random.uniform(k_adj, (N, N), dtype=jnp.float32)

    weights = [
        (0.1 * jax.random.normal(k_w0, (F_IN, F_HID), dtype=jnp.float32),
         0.1 * jax.random.normal(k_b0, (F_HID,), dtype=jnp.float32)),
        (0.1 * jax.random.normal(k_w1, (F_HID, F_OUT), dtype=jnp.float32),
         0.1 * jax.random.normal(k_b1, (F_OUT,), dtype=jnp.float32)),
    ]

    # --- single-graph path (matches the PyTorch module signature) ---
    out = jax.block_until_ready(gcn_inference(x, adj, weights))
    ref = _reference_single(x, adj, weights)
    assert out.shape == (N, F_OUT), out.shape
    assert jnp.allclose(out, ref, atol=1e-4, rtol=1e-4), "single-graph mismatch"

    # --- batched path (one pallas_call, grid over graphs, weights resident) ---
    xb = jax.random.normal(k_xb, (B, N, F_IN), dtype=jnp.float32)
    adjb = jax.random.uniform(k_adjb, (B, N, N), dtype=jnp.float32)
    outb = jax.block_until_ready(gcn_inference_batched(xb, adjb, weights))
    refb = jnp.stack(
        [_reference_single(xb[i], adjb[i], weights) for i in range(B)], axis=0)
    assert outb.shape == (B, N, F_OUT), outb.shape
    assert jnp.allclose(outb, refb, atol=1e-4, rtol=1e-4), "batched mismatch"

    print("KERNEL_OK")
</pallas_src>

<mosaic_0001>
module attributes {stable_mosaic.version = 11 : i64} {
  func.func @_fused_gcn_kernel(%arg0: i32, %arg1: memref<1x8x8xf32, #tpu.memory_space<vmem>>, %arg2: memref<1x8x128xf32, #tpu.memory_space<vmem>>, %arg3: memref<128x128xf32, #tpu.memory_space<vmem>>, %arg4: memref<1x128xf32, #tpu.memory_space<vmem>>, %arg5: memref<128x128xf32, #tpu.memory_space<vmem>>, %arg6: memref<1x128xf32, #tpu.memory_space<vmem>>, %arg7: memref<1x8x128xf32, #tpu.memory_space<vmem>>) attributes {dimension_semantics = [#tpu.dimension_semantics<parallel>], iteration_bounds = array<i64: 1>, scalar_prefetch = 0 : i64, scratch_operands = 0 : i64, tpu.core_type = #tpu.core_type<tc>, window_params = [{transform_indices = @transform_0, window_bounds = array<i64: 1, 8, 8>}, {transform_indices = @transform_1, window_bounds = array<i64: 1, 8, 128>}, {pipeline_mode = #tpu.pipeline_mode<synchronous>, transform_indices = @transform_2, window_bounds = array<i64: 128, 128>}, {pipeline_mode = #tpu.pipeline_mode<synchronous>, transform_indices = @transform_3, window_bounds = array<i64: 1, 128>}, {pipeline_mode = #tpu.pipeline_mode<synchronous>, transform_indices = @transform_4, window_bounds = array<i64: 128, 128>}, {pipeline_mode = #tpu.pipeline_mode<synchronous>, transform_indices = @transform_5, window_bounds = array<i64: 1, 128>}, {transform_indices = @transform_6, window_bounds = array<i64: 1, 8, 128>}]} {
    %c0 = arith.constant 0 : index
    %c0_0 = arith.constant 0 : index
    %c0_1 = arith.constant 0 : index
    %0 = vector.load %arg1[%c0, %c0_0, %c0_1] : memref<1x8x8xf32, #tpu.memory_space<vmem>>, vector<1x8x8xf32>
    %1 = vector.shape_cast %0 : vector<1x8x8xf32> to vector<8x8xf32>
    %c0_2 = arith.constant 0 : index
    %c0_3 = arith.constant 0 : index
    %c0_4 = arith.constant 0 : index
    %2 = vector.load %arg2[%c0_2, %c0_3, %c0_4] : memref<1x8x128xf32, #tpu.memory_space<vmem>>, vector<1x8x128xf32>
    %3 = vector.shape_cast %2 : vector<1x8x128xf32> to vector<8x128xf32>
    %c0_5 = arith.constant 0 : index
    %c0_6 = arith.constant 0 : index
    %4 = vector.load %arg3[%c0_5, %c0_6] : memref<128x128xf32, #tpu.memory_space<vmem>>, vector<128x128xf32>
    %c0_7 = arith.constant 0 : index
    %c0_8 = arith.constant 0 : index
    %5 = vector.load %arg4[%c0_7, %c0_8] : memref<1x128xf32, #tpu.memory_space<vmem>>, vector<1x128xf32>
    %cst = arith.constant dense<0.000000e+00> : vector<8x128xf32>
    %6 = tpu.matmul %3, %4, %cst {dimension_numbers = #tpu.dot_dimension_numbers<[1], [0], [0], [1], [0, 0, 1, 1], [], []>} : vector<8x128xf32>, vector<128x128xf32>, vector<8x128xf32> -> vector<8x128xf32>
    %cst_9 = arith.constant dense<0.000000e+00> : vector<8x128xf32>
    %7 = tpu.matmul %1, %6, %cst_9 {dimension_numbers = #tpu.dot_dimension_numbers<[1], [0], [0], [1], [0, 0, 1, 1], [], []>} : vector<8x8xf32>, vector<8x128xf32>, vector<8x128xf32> -> vector<8x128xf32>
    %8 = vector.broadcast %5 : vector<1x128xf32> to vector<8x128xf32>
    %9 = arith.addf %7, %8 : vector<8x128xf32>
    %cst_10 = arith.constant 0.000000e+00 : f32
    %10 = vector.broadcast %cst_10 : f32 to vector<8x128xf32>
    %11 = arith.maximumf %9, %10 : vector<8x128xf32>
    %c0_11 = arith.constant 0 : index
    %c0_12 = arith.constant 0 : index
    %12 = vector.load %arg5[%c0_11, %c0_12] : memref<128x128xf32, #tpu.memory_space<vmem>>, vector<128x128xf32>
    %c0_13 = arith.constant 0 : index
    %c0_14 = arith.constant 0 : index
    %13 = vector.load %arg6[%c0_13, %c0_14] : memref<1x128xf32, #tpu.memory_space<vmem>>, vector<1x128xf32>
    %cst_15 = arith.constant dense<0.000000e+00> : vector<8x128xf32>
    %14 = tpu.matmul %11, %12, %cst_15 {dimension_numbers = #tpu.dot_dimension_numbers<[1], [0], [0], [1], [0, 0, 1, 1], [], []>} : vector<8x128xf32>, vector<128x128xf32>, vector<8x128xf32> -> vector<8x128xf32>
    %cst_16 = arith.constant dense<0.000000e+00> : vector<8x128xf32>
    %15 = tpu.matmul %1, %14, %cst_16 {dimension_numbers = #tpu.dot_dimension_numbers<[1], [0], [0], [1], [0, 0, 1, 1], [], []>} : vector<8x8xf32>, vector<8x128xf32>, vector<8x128xf32> -> vector<8x128xf32>
    %16 = vector.broadcast %13 : vector<1x128xf32> to vector<8x128xf32>
    %17 = arith.addf %15, %16 : vector<8x128xf32>
    %c0_17 = arith.constant 0 : index
    %c0_18 = arith.constant 0 : index
    %c0_19 = arith.constant 0 : index
    %18 = vector.load %arg7[%c0_17, %c0_18, %c0_19] : memref<1x8x128xf32, #tpu.memory_space<vmem>>, vector<1x8x128xf32>
    %19 = vector.shape_cast %18 : vector<1x8x128xf32> to vector<8x128xf32>
    %20 = vector.shape_cast %17 : vector<8x128xf32> to vector<1x8x128xf32>
    tpu.vector_store %arg7[%c0_17, %c0_18, %c0_19], %20 {strides = array<i32>} : memref<1x8x128xf32, #tpu.memory_space<vmem>>, vector<1x8x128xf32>,
    return
  }
  func.func @transform_0(%arg0: i32) -> (i32, i32, i32) {
    %c0_i32 = arith.constant 0 : i32
    %c0_i32_0 = arith.constant 0 : i32
    %c0_i32_1 = arith.constant 0 : i32
    return %arg0, %c0_i32, %c0_i32_0 : i32, i32, i32
  }
  func.func @transform_1(%arg0: i32) -> (i32, i32, i32) {
    %c0_i32 = arith.constant 0 : i32
    %c0_i32_0 = arith.constant 0 : i32
    %c0_i32_1 = arith.constant 0 : i32
    return %arg0, %c0_i32, %c0_i32_0 : i32, i32, i32
  }
  func.func @transform_2(%arg0: i32) -> (i32, i32) {
    %c0_i32 = arith.constant 0 : i32
    %c0_i32_0 = arith.constant 0 : i32
    %c0_i32_1 = arith.constant 0 : i32
    return %c0_i32, %c0_i32_0 : i32, i32
  }
  func.func @transform_3(%arg0: i32) -> (i32, i32) {
    %c0_i32 = arith.constant 0 : i32
    %c0_i32_0 = arith.constant 0 : i32
    %c0_i32_1 = arith.constant 0 : i32
    return %c0_i32, %c0_i32_0 : i32, i32
  }
  func.func @transform_4(%arg0: i32) -> (i32, i32) {
    %c0_i32 = arith.constant 0 : i32
    %c0_i32_0 = arith.constant 0 : i32
    %c0_i32_1 = arith.constant 0 : i32
    return %c0_i32, %c0_i32_0 : i32, i32
  }
  func.func @transform_5(%arg0: i32) -> (i32, i32) {
    %c0_i32 = arith.constant 0 : i32
    %c0_i32_0 = arith.constant 0 : i32
    %c0_i32_1 = arith.constant 0 : i32
    return %c0_i32, %c0_i32_0 : i32, i32
  }
  func.func @transform_6(%arg0: i32) -> (i32, i32, i32) {
    %c0_i32 = arith.constant 0 : i32
    %c0_i32_0 = arith.constant 0 : i32
    %c0_i32_1 = arith.constant 0 : i32
    return %arg0, %c0_i32, %c0_i32_0 : i32, i32, i32
  }
}

</mosaic_0001>

<llo_original>
// kernel: tpu_custom_call.1
$region0: #{tpu_custom_call.1}
  #allocation0 [shape = 'u32[]', space=smem, size = 0x4, offset = 0x4, fixed_abs, tag = 'smem constant byte address 0x4 - core index']
  #allocation1 [shape = 'u32[144,128]{1,0:T(1,128)}', space=vmem, size = 0x12000, scoped, tag = 'internal scratch']
  %s0 = inlined_call_operand.hbm [shape: f32[1,8,8], index: 0, kind: input, shape index: {}]
  %s1 = inlined_call_operand.hbm [shape: f32[1,8,128], index: 1, kind: input, shape index: {}]
  %s2 = inlined_call_operand.hbm [shape: f32[128,128], index: 2, kind: input, shape index: {}]
  %s3 = inlined_call_operand.vmem [shape: f32[1,128], index: 3, kind: input, shape index: {}]
  %s4 = inlined_call_operand.hbm [shape: f32[128,128], index: 4, kind: input, shape index: {}]
  %s5 = inlined_call_operand.vmem [shape: f32[1,128], index: 5, kind: input, shape index: {}]
  %s6 = inlined_call_operand.hbm [shape: f32[1,8,128], index: 6, kind: output, shape index: {}]
  %s7 = sld [smem:[#allocation0]]
  $region50: #{tpu_custom_call.1} parent=0
    _
  %s9 = ssub.s32 1, %s7
  %s10 = scalar_select 0, %s9, %s7
  $region1: #{tpu_custom_call.1} parent=0
    #allocation2 [shape = 'u8[4096]{0}', space=vmem, size = 0x1000, scoped, tag = 'input window, operand 0, single buffered']
    #allocation3 [shape = 's32[1]{0}', space=sflag, size = 0x4, scoped, tag = 'scoped memory for tpu_custom_call.1']
    #allocation4 [shape = 's32[1]{0}', space=sflag, size = 0x4, scoped, tag = 'scoped memory for tpu_custom_call.1']
    #allocation5 [shape = 'u8[4096]{0}', space=vmem, size = 0x1000, scoped, tag = 'input window, operand 1, single buffered']
    #allocation6 [shape = 's32[1]{0}', space=sflag, size = 0x4, scoped, tag = 'scoped memory for tpu_custom_call.1']
    #allocation7 [shape = 'u8[65536]{0}', space=vmem, size = 0x10000, scoped, tag = 'input window, operand 2, single buffered']
    #allocation8 [shape = 'u8[65536]{0}', space=vmem, size = 0x10000, scoped, tag = 'input window, operand 4, single buffered']
    #allocation9 [shape = 's32[1]{0}', space=sflag, size = 0x4, scoped, tag = 'scoped memory for tpu_custom_call.1']
    #allocation10 [shape = 'u8[4096]{0}', space=vmem, size = 0x1000, scoped, tag = 'output window, operand 0, single buffered']
    %11 = vsyncpa [#allocation3], 0
    %12 = vsyncpa [#allocation6], 0
    %13 = vsyncpa [#allocation9], 0
    %14 = vsyncpa [#allocation4], 0
    // Predicated region
    $region2: #{tpu_custom_call.1} parent=1 // pred_check
      _
    $region3: #{tpu_custom_call.1} parent=1 // pred_check_branch
      %16 = sbr.rel (0) target = $region5
    $region4: #{tpu_custom_call.1} parent=1 // pred_region
      %s18 = ssub.s32 128, 128
      %19 = vsyncadd [#allocation3], %s18
      %s21 = sshll.u32 [#allocation2], 4
      %s22 = int_to_ptr.vmem [resolvable:$true] %s21
      %24 = dma.hbm_to_vmem [thread:$0]  %s0, 128, %s22, [#allocation3]
    $region5: #{tpu_custom_call.1} parent=1 // pred_fallthru
      _
    // Predicated region
    $region6: #{tpu_custom_call.1} parent=1 // pred_check
      _
    $region7: #{tpu_custom_call.1} parent=1 // pred_check_branch
      %26 = sbr.rel (0) target = $region9
    $region8: #{tpu_custom_call.1} parent=1 // pred_region
      %s28 = ssub.s32 128, 128
      %29 = vsyncadd [#allocation6], %s28
      %s31 = sshll.u32 [#allocation5], 4
      %s32 = int_to_ptr.vmem [resolvable:$true] %s31
      %34 = dma.hbm_to_vmem [thread:$0]  %s1, 128, %s32, [#allocation6]
    $region9: #{tpu_custom_call.1} parent=1 // pred_fallthru
      _
    // Predicated region
    $region10: #{tpu_custom_call.1} parent=1 // pred_check
      _
    $region11: #{tpu_custom_call.1} parent=1 // pred_check_branch
      %36 = sbr.rel (0) target = $region13
    $region12: #{tpu_custom_call.1} parent=1 // pred_region
      %s38 = ssub.s32 2048, 2048
      %39 = vsyncadd [#allocation6], %s38
      %s40 = sshll.u32 [#allocation7], 4
      %s41 = int_to_ptr.vmem [resolvable:$true] %s40
      %46 = dma.hbm_to_vmem [thread:$0]  %s2, 2048, %s41, [#allocation6], 128, 128, 8
    $region13: #{tpu_custom_call.1} parent=1 // pred_fallthru
      _
    // Predicated region
    $region14: #{tpu_custom_call.1} parent=1 // pred_check
      _
    $region15: #{tpu_custom_call.1} parent=1 // pred_check_branch
      %48 = sbr.rel (0) target = $region17
    $region16: #{tpu_custom_call.1} parent=1 // pred_region
      _
    $region17: #{tpu_custom_call.1} parent=1 // pred_fallthru
      _
    // Predicated region
    $region18: #{tpu_custom_call.1} parent=1 // pred_check
      _
    $region19: #{tpu_custom_call.1} parent=1 // pred_check_branch
      %50 = sbr.rel (0) target = $region21
    $region20: #{tpu_custom_call.1} parent=1 // pred_region
      %s52 = ssub.s32 2048, 2048
      %53 = vsyncadd [#allocation9], %s52
      %s54 = sshll.u32 [#allocation8], 4
      %s55 = int_to_ptr.vmem [resolvable:$true] %s54
      %60 = dma.hbm_to_vmem [thread:$0]  %s4, 2048, %s55, [#allocation9], 128, 128, 8
    $region21: #{tpu_custom_call.1} parent=1 // pred_fallthru
      _
    // Predicated region
    $region22: #{tpu_custom_call.1} parent=1 // pred_check
      _
    $region23: #{tpu_custom_call.1} parent=1 // pred_check_branch
      %62 = sbr.rel (0) target = $region25
    $region24: #{tpu_custom_call.1} parent=1 // pred_region
      _
    $region25: #{tpu_custom_call.1} parent=1 // pred_fallthru
      _
    // Predicated region
    $region26: #{tpu_custom_call.1} parent=1 // pred_check
      _
    $region27: #{tpu_custom_call.1} parent=1 // pred_check_branch
      %64 = sbr.rel (0) target = $region29
    $region28: #{tpu_custom_call.1} parent=1 // pred_region
      %65 = dma.done [#allocation3], 128
    $region29: #{tpu_custom_call.1} parent=1 // pred_fallthru
      _
    // Predicated region
    $region30: #{tpu_custom_call.1} parent=1 // pred_check
      _
    $region31: #{tpu_custom_call.1} parent=1 // pred_check_branch
      %67 = sbr.rel (0) target = $region33
    $region32: #{tpu_custom_call.1} parent=1 // pred_region
      %68 = dma.done [#allocation6], 128
    $region33: #{tpu_custom_call.1} parent=1 // pred_fallthru
      _
    // Predicated region
    $region34: #{tpu_custom_call.1} parent=1 // pred_check
      _
    $region35: #{tpu_custom_call.1} parent=1 // pred_check_branch
      %70 = sbr.rel (0) target = $region37
    $region36: #{tpu_custom_call.1} parent=1 // pred_region
      %71 = dma.done [#allocation6], 2048
    $region37: #{tpu_custom_call.1} parent=1 // pred_fallthru
      _
    // Predicated region
    $region38: #{tpu_custom_call.1} parent=1 // pred_check
      _
    $region39: #{tpu_custom_call.1} parent=1 // pred_check_branch
      %73 = sbr.rel (0) target = $region41
    $region40: #{tpu_custom_call.1} parent=1 // pred_region
      %74 = dma.done [#allocation9], 2048
    $region41: #{tpu_custom_call.1} parent=1 // pred_fallthru
      _
    %v75 = vld [vmem:[#allocation2] sm:$0xff]
    %v76 = vld [vmem:[#allocation5] sm:$0xff]
    %v77 = vld [vmem:[#allocation7] sm:$0xff]
    %v78 = vld [vmem:[#allocation7 + $0x8] sm:$0xff]
    %v79 = vld [vmem:[#allocation7 + $0x10] sm:$0xff]
    %v80 = vld [vmem:[#allocation7 + $0x18] sm:$0xff]
    %v81 = vld [vmem:[#allocation7 + $0x20] sm:$0xff]
    %v82 = vld [vmem:[#allocation7 + $0x28] sm:$0xff]
    %v83 = vld [vmem:[#allocation7 + $0x30] sm:$0xff]
    %v84 = vld [vmem:[#allocation7 + $0x38] sm:$0xff]
    %v85 = vld [vmem:[#allocation7 + $0x40] sm:$0xff]
    %v86 = vld [vmem:[#allocation7 + $0x48] sm:$0xff]
    %v87 = vld [vmem:[#allocation7 + $0x50] sm:$0xff]
    %v88 = vld [vmem:[#allocation7 + $0x58] sm:$0xff]
    %v89 = vld [vmem:[#allocation7 + $0x60] sm:$0xff]
    %v90 = vld [vmem:[#allocation7 + $0x68] sm:$0xff]
    %v91 = vld [vmem:[#allocation7 + $0x70] sm:$0xff]
    %v92 = vld [vmem:[#allocation7 + $0x78] sm:$0xff]
    %v93 = vld [vmem:[%s3] sm:$0x1]
    %94 = vmatprep.subr.mxu0 0.0
    %95 = vmatpush1.msra.mxu0 %v77
    %96 = vmatprep.subr.mxu0 0.0
    %97 = vmatpush1.msra.mxu0 %v78
    %98 = vmatprep.subr.mxu0 0.0
    %99 = vmatpush1.msra.mxu0 %v79
    %100 = vmatprep.subr.mxu0 0.0
    %101 = vmatpush1.msra.mxu0 %v80
    %102 = vmatprep.subr.mxu0 0.0
    %103 = vmatpush1.msra.mxu0 %v81
    %104 = vmatprep.subr.mxu0 0.0
    %105 = vmatpush1.msra.mxu0 %v82
    %106 = vmatprep.subr.mxu0 0.0
    %107 = vmatpush1.msra.mxu0 %v83
    %108 = vmatprep.subr.mxu0 0.0
    %109 = vmatpush1.msra.mxu0 %v84
    %110 = vmatprep.subr.mxu0 0.0
    %111 = vmatpush1.msra.mxu0 %v85
    %112 = vmatprep.subr.mxu0 0.0
    %113 = vmatpush1.msra.mxu0 %v86
    %114 = vmatprep.subr.mxu0 0.0
    %115 = vmatpush1.msra.mxu0 %v87
    %116 = vmatprep.subr.mxu0 0.0
    %117 = vmatpush1.msra.mxu0 %v88
    %118 = vmatprep.subr.mxu0 0.0
    %119 = vmatpush1.msra.mxu0 %v89
    %120 = vmatprep.subr.mxu0 0.0
    %121 = vmatpush1.msra.mxu0 %v90
    %122 = vmatprep.subr.mxu0 0.0
    %123 = vmatpush1.msra.mxu0 %v91
    %124 = vmatprep.subr.mxu0 0.0
    %125 = vmatpush1.msra.mxu0 %v92
    %126 = vmatprep.subr.mxu0 0.0
    %127 = vmatpush1.msra.mxu0 0.0
    %128 = vmatprep.subr.mxu0 0.0
    %129 = vmatpush1.msra.mxu0 0.0
    %130 = vmatprep.subr.mxu0 0.0
    %131 = vmatpush1.msra.mxu0 0.0
    %132 = vmatprep.subr.mxu0 0.0
    %133 = vmatpush1.msra.mxu0 0.0
    %134 = vmatprep.subr.mxu0 0.0
    %135 = vmatpush1.msra.mxu0 0.0
    %136 = vmatprep.subr.mxu0 0.0
    %137 = vmatpush1.msra.mxu0 0.0
    %138 = vmatprep.subr.mxu0 0.0
    %139 = vmatpush1.msra.mxu0 0.0
    %140 = vmatprep.subr.mxu0 0.0
    %141 = vmatpush1.msra.mxu0 0.0
    %142 = vmatprep.subr.mxu0 0.0
    %143 = vmatpush1.msra.mxu0 0.0
    %144 = vmatprep.subr.mxu0 0.0
    %145 = vmatpush1.msra.mxu0 0.0
    %146 = vmatprep.subr.mxu0 0.0
    %147 = vmatpush1.msra.mxu0 0.0
    %148 = vmatprep.subr.mxu0 0.0
    %149 = vmatpush1.msra.mxu0 0.0
    %150 = vmatprep.subr.mxu0 0.0
    %151 = vmatpush1.msra.mxu0 0.0
    %152 = vmatprep.subr.mxu0 0.0
    %153 = vmatpush1.msra.mxu0 0.0
    %154 = vmatprep.subr.mxu0 0.0
    %155 = vmatpush1.msra.mxu0 0.0
    %156 = vmatprep.subr.mxu0 0.0
    %157 = vmatpush1.msra.mxu0 0.0
    %158 = vmatprep.mubr.f32.mxu0 0.0
    %159 = vmatmul.mubr.f32.gmra.mrb[0].mxu0 %v76
    %v160 = vpop.f32.mrb[0].mxu0
    %v161 = vadd.f32 0.0, %v160
    %v162 = vpop.f32.mrb[0].mxu0
    %163 = vdwg.mxu0
    %v165 = vlaneseq
    %v166 = vshrl.u32 %v165, 7
    %v167 = vsub.s32 0, %v166
    %v168 = vrot.slane %v93, %v167
    %vm170 = vcmask 64512
    %v172 = vsel %vm170, %v75, 0
    %174 = vmatprep.subr.mxu0 0.0
    %175 = vmatpush1.msra.mxu0 %v161
    %176 = vmatprep.subr.mxu0 0.0
    %177 = vmatpush1.msra.mxu0 0.0
    %178 = vmatprep.subr.mxu0 0.0
    %179 = vmatpush1.msra.mxu0 0.0
    %180 = vmatprep.subr.mxu0 0.0
    %181 = vmatpush1.msra.mxu0 0.0
    %182 = vmatprep.subr.mxu0 0.0
    %183 = vmatpush1.msra.mxu0 0.0
    %184 = vmatprep.subr.mxu0 0.0
    %185 = vmatpush1.msra.mxu0 0.0
    %186 = vmatprep.subr.mxu0 0.0
    %187 = vmatpush1.msra.mxu0 0.0
    %188 = vmatprep.subr.mxu0 0.0
    %189 = vmatpush1.msra.mxu0 0.0
    %190 = vmatprep.subr.mxu0 0.0
    %191 = vmatpush1.msra.mxu0 0.0
    %192 = vmatprep.subr.mxu0 0.0
    %193 = vmatpush1.msra.mxu0 0.0
    %194 = vmatprep.subr.mxu0 0.0
    %195 = vmatpush1.msra.mxu0 0.0
    %196 = vmatprep.subr.mxu0 0.0
    %197 = vmatpush1.msra.mxu0 0.0
    %198 = vmatprep.subr.mxu0 0.0
    %199 = vmatpush1.msra.mxu0 0.0
    %200 = vmatprep.subr.mxu0 0.0
    %201 = vmatpush1.msra.mxu0 0.0
    %202 = vmatprep.subr.mxu0 0.0
    %203 = vmatpush1.msra.mxu0 0.0
    %204 = vmatprep.subr.mxu0 0.0
    %205 = vmatpush1.msra.mxu0 0.0
    %206 = vmatprep.subr.mxu0 0.0
    %207 = vmatpush1.msra.mxu0 0.0
    %208 = vmatprep.subr.mxu0 0.0
    %209 = vmatpush1.msra.mxu0 0.0
    %210 = vmatprep.subr.mxu0 0.0
    %211 = vmatpush1.msra.mxu0 0.0
    %212 = vmatprep.subr.mxu0 0.0
    %213 = vmatpush1.msra.mxu0 0.0
    %214 = vmatprep.subr.mxu0 0.0
    %215 = vmatpush1.msra.mxu0 0.0
    %216 = vmatprep.subr.mxu0 0.0
    %217 = vmatpush1.msra.mxu0 0.0
    %218 = vmatprep.subr.mxu0 0.0
    %219 = vmatpush1.msra.mxu0 0.0
    %220 = vmatprep.subr.mxu0 0.0
    %221 = vmatpush1.msra.mxu0 0.0
    %222 = vmatprep.subr.mxu0 0.0
    %223 = vmatpush1.msra.mxu0 0.0
    %224 = vmatprep.subr.mxu0 0.0
    %225 = vmatpush1.msra.mxu0 0.0
    %226 = vmatprep.subr.mxu0 0.0
    %227 = vmatpush1.msra.mxu0 0.0
    %228 = vmatprep.subr.mxu0 0.0
    %229 = vmatpush1.msra.mxu0 0.0
    %230 = vmatprep.subr.mxu0 0.0
    %231 = vmatpush1.msra.mxu0 0.0
    %232 = vmatprep.subr.mxu0 0.0
    %233 = vmatpush1.msra.mxu0 0.0
    %234 = vmatprep.subr.mxu0 0.0
    %235 = vmatpush1.msra.mxu0 0.0
    %236 = vmatprep.subr.mxu0 0.0
    %237 = vmatpush1.msra.mxu0 0.0
    %238 = vmatprep.mubr.f32.mxu0 0.0
    %239 = vmatmul.mubr.f32.gmra.mrb[0].mxu0 %v172
    %v240 = vpop.f32.mrb[0].mxu0
    %v241 = vadd.f32 %v168, %v240
    %v242 = vpop.f32.mrb[0].mxu0
    %243 = vdwg.mxu0
    %v244 = vmax.f32 %v241, 0.0
    %v245 = vld [vmem:[#allocation8] sm:$0xff]
    %v246 = vld [vmem:[#allocation8 + $0x8] sm:$0xff]
    %v247 = vld [vmem:[#allocation8 + $0x10] sm:$0xff]
    %v248 = vld [vmem:[#allocation8 + $0x18] sm:$0xff]
    %v249 = vld [vmem:[#allocation8 + $0x20] sm:$0xff]
    %v250 = vld [vmem:[#allocation8 + $0x28] sm:$0xff]
    %v251 = vld [vmem:[#allocation8 + $0x30] sm:$0xff]
    %v252 = vld [vmem:[#allocation8 + $0x38] sm:$0xff]
    %v253 = vld [vmem:[#allocation8 + $0x40] sm:$0xff]
    %v254 = vld [vmem:[#allocation8 + $0x48] sm:$0xff]
    %v255 = vld [vmem:[#allocation8 + $0x50] sm:$0xff]
    %v256 = vld [vmem:[#allocation8 + $0x58] sm:$0xff]
    %v257 = vld [vmem:[#allocation8 + $0x60] sm:$0xff]
    %v258 = vld [vmem:[#allocation8 + $0x68] sm:$0xff]
    %v259 = vld [vmem:[#allocation8 + $0x70] sm:$0xff]
    %v260 = vld [vmem:[#allocation8 + $0x78] sm:$0xff]
    %v261 = vld [vmem:[%s5] sm:$0x1]
    %262 = vmatprep.subr.mxu0 0.0
    %263 = vmatpush1.msra.mxu0 %v245
    %264 = vmatprep.subr.mxu0 0.0
    %265 = vmatpush1.msra.mxu0 %v246
    %266 = vmatprep.subr.mxu0 0.0
    %267 = vmatpush1.msra.mxu0 %v247
    %268 = vmatprep.subr.mxu0 0.0
    %269 = vmatpush1.msra.mxu0 %v248
    %270 = vmatprep.subr.mxu0 0.0
    %271 = vmatpush1.msra.mxu0 %v249
    %272 = vmatprep.subr.mxu0 0.0
    %273 = vmatpush1.msra.mxu0 %v250
    %274 = vmatprep.subr.mxu0 0.0
    %275 = vmatpush1.msra.mxu0 %v251
    %276 = vmatprep.subr.mxu0 0.0
    %277 = vmatpush1.msra.mxu0 %v252
    %278 = vmatprep.subr.mxu0 0.0
    %279 = vmatpush1.msra.mxu0 %v253
    %280 = vmatprep.subr.mxu0 0.0
    %281 = vmatpush1.msra.mxu0 %v254
    %282 = vmatprep.subr.mxu0 0.0
    %283 = vmatpush1.msra.mxu0 %v255
    %284 = vmatprep.subr.mxu0 0.0
    %285 = vmatpush1.msra.mxu0 %v256
    %286 = vmatprep.subr.mxu0 0.0
    %287 = vmatpush1.msra.mxu0 %v257
    %288 = vmatprep.subr.mxu0 0.0
    %289 = vmatpush1.msra.mxu0 %v258
    %290 = vmatprep.subr.mxu0 0.0
    %291 = vmatpush1.msra.mxu0 %v259
    %292 = vmatprep.subr.mxu0 0.0
    %293 = vmatpush1.msra.mxu0 %v260
    %294 = vmatprep.subr.mxu0 0.0
    %295 = vmatpush1.msra.mxu0 0.0
    %296 = vmatprep.subr.mxu0 0.0
    %297 = vmatpush1.msra.mxu0 0.0
    %298 = vmatprep.subr.mxu0 0.0
    %299 = vmatpush1.msra.mxu0 0.0
    %300 = vmatprep.subr.mxu0 0.0
    %301 = vmatpush1.msra.mxu0 0.0
    %302 = vmatprep.subr.mxu0 0.0
    %303 = vmatpush1.msra.mxu0 0.0
    %304 = vmatprep.subr.mxu0 0.0
    %305 = vmatpush1.msra.mxu0 0.0
    %306 = vmatprep.subr.mxu0 0.0
    %307 = vmatpush1.msra.mxu0 0.0
    %308 = vmatprep.subr.mxu0 0.0
    %309 = vmatpush1.msra.mxu0 0.0
    %310 = vmatprep.subr.mxu0 0.0
    %311 = vmatpush1.msra.mxu0 0.0
    %312 = vmatprep.subr.mxu0 0.0
    %313 = vmatpush1.msra.mxu0 0.0
    %314 = vmatprep.subr.mxu0 0.0
    %315 = vmatpush1.msra.mxu0 0.0
    %316 = vmatprep.subr.mxu0 0.0
    %317 = vmatpush1.msra.mxu0 0.0
    %318 = vmatprep.subr.mxu0 0.0
    %319 = vmatpush1.msra.mxu0 0.0
    %320 = vmatprep.subr.mxu0 0.0
    %321 = vmatpush1.msra.mxu0 0.0
    %322 = vmatprep.subr.mxu0 0.0
    %323 = vmatpush1.msra.mxu0 0.0
    %324 = vmatprep.subr.mxu0 0.0
    %325 = vmatpush1.msra.mxu0 0.0
    %326 = vmatprep.mubr.f32.mxu0 0.0
    %327 = vmatmul.mubr.f32.gmra.mrb[0].mxu0 %v244
    %v328 = vpop.f32.mrb[0].mxu0
    %v329 = vadd.f32 0.0, %v328
    %v330 = vpop.f32.mrb[0].mxu0
    %331 = vdwg.mxu0
    %v333 = vlaneseq
    %v334 = vshrl.u32 %v333, 7
    %v335 = vsub.s32 0, %v334
    %v336 = vrot.slane %v261, %v335
    %338 = vmatprep.subr.mxu0 0.0
    %339 = vmatpush1.msra.mxu0 %v329
    %340 = vmatprep.subr.mxu0 0.0
    %341 = vmatpush1.msra.mxu0 0.0
    %342 = vmatprep.subr.mxu0 0.0
    %343 = vmatpush1.msra.mxu0 0.0
    %344 = vmatprep.subr.mxu0 0.0
    %345 = vmatpush1.msra.mxu0 0.0
    %346 = vmatprep.subr.mxu0 0.0
    %347 = vmatpush1.msra.mxu0 0.0
    %348 = vmatprep.subr.mxu0 0.0
    %349 = vmatpush1.msra.mxu0 0.0
    %350 = vmatprep.subr.mxu0 0.0
    %351 = vmatpush1.msra.mxu0 0.0
    %352 = vmatprep.subr.mxu0 0.0
    %353 = vmatpush1.msra.mxu0 0.0
    %354 = vmatprep.subr.mxu0 0.0
    %355 = vmatpush1.msra.mxu0 0.0
    %356 = vmatprep.subr.mxu0 0.0
    %357 = vmatpush1.msra.mxu0 0.0
    %358 = vmatprep.subr.mxu0 0.0
    %359 = vmatpush1.msra.mxu0 0.0
    %360 = vmatprep.subr.mxu0 0.0
    %361 = vmatpush1.msra.mxu0 0.0
    %362 = vmatprep.subr.mxu0 0.0
    %363 = vmatpush1.msra.mxu0 0.0
    %364 = vmatprep.subr.mxu0 0.0
    %365 = vmatpush1.msra.mxu0 0.0
    %366 = vmatprep.subr.mxu0 0.0
    %367 = vmatpush1.msra.mxu0 0.0
    %368 = vmatprep.subr.mxu0 0.0
    %369 = vmatpush1.msra.mxu0 0.0
    %370 = vmatprep.subr.mxu0 0.0
    %371 = vmatpush1.msra.mxu0 0.0
    %372 = vmatprep.subr.mxu0 0.0
    %373 = vmatpush1.msra.mxu0 0.0
    %374 = vmatprep.subr.mxu0 0.0
    %375 = vmatpush1.msra.mxu0 0.0
    %376 = vmatprep.subr.mxu0 0.0
    %377 = vmatpush1.msra.mxu0 0.0
    %378 = vmatprep.subr.mxu0 0.0
    %379 = vmatpush1.msra.mxu0 0.0
    %380 = vmatprep.subr.mxu0 0.0
    %381 = vmatpush1.msra.mxu0 0.0
    %382 = vmatprep.subr.mxu0 0.0
    %383 = vmatpush1.msra.mxu0 0.0
    %384 = vmatprep.subr.mxu0 0.0
    %385 = vmatpush1.msra.mxu0 0.0
    %386 = vmatprep.subr.mxu0 0.0
    %387 = vmatpush1.msra.mxu0 0.0
    %388 = vmatprep.subr.mxu0 0.0
    %389 = vmatpush1.msra.mxu0 0.0
    %390 = vmatprep.subr.mxu0 0.0
    %391 = vmatpush1.msra.mxu0 0.0
    %392 = vmatprep.subr.mxu0 0.0
    %393 = vmatpush1.msra.mxu0 0.0
    %394 = vmatprep.subr.mxu0 0.0
    %395 = vmatpush1.msra.mxu0 0.0
    %396 = vmatprep.subr.mxu0 0.0
    %397 = vmatpush1.msra.mxu0 0.0
    %398 = vmatprep.subr.mxu0 0.0
    %399 = vmatpush1.msra.mxu0 0.0
    %400 = vmatprep.subr.mxu0 0.0
    %401 = vmatpush1.msra.mxu0 0.0
    %402 = vmatprep.mubr.f32.mxu0 0.0
    %403 = vmatmul.mubr.f32.gmra.mrb[0].mxu0 %v172
    %v404 = vpop.f32.mrb[0].mxu0
    %v405 = vadd.f32 %v336, %v404
    %v406 = vpop.f32.mrb[0].mxu0
    %407 = vdwg.mxu0
    %408 = vst [vmem:[#allocation10] sm:$0xff] %v405
    // Predicated region
    $region42: #{tpu_custom_call.1} parent=1 // pred_check
      _
    $region43: #{tpu_custom_call.1} parent=1 // pred_check_branch
      %410 = sbr.rel (0) target = $region45
    $region44: #{tpu_custom_call.1} parent=1 // pred_region
      %s412 = ssub.s32 128, 128
      %413 = vsyncadd [#allocation4], %s412
      %s415 = sshll.u32 [#allocation10], 4
      %s416 = int_to_ptr.vmem [resolvable:$true] %s415
      %418 = dma.vmem_to_hbm [thread:$0]  %s416, 128, %s6, [#allocation4]
    $region45: #{tpu_custom_call.1} parent=1 // pred_fallthru
      _
    // Predicated region
    $region46: #{tpu_custom_call.1} parent=1 // pred_check
      _
    $region47: #{tpu_custom_call.1} parent=1 // pred_check_branch
      %420 = sbr.rel (0) target = $region49
    $region48: #{tpu_custom_call.1} parent=1 // pred_region
      %421 = dma.done [#allocation4], 128
    $region49: #{tpu_custom_call.1} parent=1 // pred_fallthru
      _
    %422 = vsyncpa [#allocation3], 1
    %423 = vsyncpa [#allocation6], 1
    %424 = vsyncpa [#allocation9], 1
    %425 = vsyncpa [#allocation4], 1

</llo_original>
